<compile_context>
chip_gen: v5e
topology: v5e:2x2
jax: 0.10.0
libtpu: 0.0.40
codegen_flags: <defaults>
</compile_context>

<pallas_src>
import functools
import math

import jax
import jax.numpy as jnp
from jax.experimental import pallas as pl
from jax.experimental.pallas import tpu as pltpu


def _round_up(x, m):
    return ((x + m - 1) // m) * m


def _linear_kernel(x_ref, w_ref, b_ref, o_ref):
    # x: (TM, k_dim) native dtype   w: (k_dim, n_dim) bf16
    # b: (1, n_dim) f32             o: (TM, B) out dtype
    xb = x_ref[...].astype(jnp.bfloat16)            # cast in-kernel (no extra HBM pass)
    acc = jnp.dot(xb, w_ref[...], preferred_element_type=jnp.float32) + b_ref[...]
    n_dim = w_ref.shape[1]
    n_out = o_ref.shape[1]
    if n_dim == n_out:                              # static: weight covers full output width
        o_ref[...] = acc.astype(o_ref.dtype)
    else:                                           # static: truncated-output case (Fout << B)
        o_ref[:, :n_dim] = acc.astype(o_ref.dtype)
        o_ref[:, n_dim:] = jnp.zeros((o_ref.shape[0], n_out - n_dim), o_ref.dtype)


def fold_linear_params(weight, bias, input_b, *, lane=128):
    """Fold the two eye() pad/trunc projections into one (k_dim, n_dim) weight + bias.

    Call once per module instance / input_b; the results are static across forwards.
    """
    out_features, in_features = weight.shape
    k = min(input_b, in_features)                   # surviving input-feature columns
    j = min(out_features, input_b)                  # surviving output-feature columns
    # Pad only to the 128-lane grain (or to input_b if that is smaller).
    k_dim = input_b if _round_up(k, lane) >= input_b else _round_up(k, lane)
    n_dim = input_b if _round_up(j, lane) >= input_b else _round_up(j, lane)

    w_eff = jnp.zeros((k_dim, n_dim), jnp.float32)
    w_eff = w_eff.at[:k, :j].set(weight[:j, :k].T)
    b_eff = jnp.zeros((1, n_dim), jnp.float32)
    if bias is not None:
        b_eff = b_eff.at[0, :j].set(bias[:j])
    return w_eff.astype(jnp.bfloat16), b_eff


def spottune_linear_forward(x, w_eff, b_eff, *, tile_m=512, out_dtype=None):
    """Per-call forward: out = pad_trunc(x @ W.T + b) using the cached folded params."""
    input_a, input_b = x.shape
    k_dim, n_dim = w_eff.shape
    out_dtype = x.dtype if out_dtype is None else out_dtype

    # ---- row-tile selection ----
    if input_a <= tile_m:
        tm = input_a                                # single block == full dim (legal, no pad)
    else:
        tm = tile_m
        assert tm % 16 == 0, "row tile should be a multiple of 16 (bf16 sublane packing)"
    m_pad = pl.cdiv(input_a, tm) * tm
    x_p = x if m_pad == input_a else jnp.pad(x, ((0, m_pad - input_a), (0, 0)))

    # ---- VMEM budget: resident weight/bias + double-buffered x/out tiles ----
    vmem_need = (w_eff.size * 2 + b_eff.size * 4
                 + 2 * tm * k_dim * x.dtype.itemsize
                 + 2 * tm * input_b * jnp.dtype(out_dtype).itemsize)
    vmem_limit = int(min(max(2 * vmem_need, 32 * 1024 * 1024), 64 * 1024 * 1024))

    out = pl.pallas_call(
        _linear_kernel,
        out_shape=jax.ShapeDtypeStruct((m_pad, input_b), out_dtype),
        grid=(m_pad // tm,),
        in_specs=[
            pl.BlockSpec((tm, k_dim), lambda i: (i, 0)),        # x row tile (pipelined)
            pl.BlockSpec((k_dim, n_dim), lambda i: (0, 0)),     # folded weight (VMEM-resident)
            pl.BlockSpec((1, n_dim), lambda i: (0, 0)),         # folded bias   (VMEM-resident)
        ],
        out_specs=pl.BlockSpec((tm, input_b), lambda i: (i, 0)),
        compiler_params=pltpu.CompilerParams(
            dimension_semantics=("parallel",),                  # shard M across TCs (v7x)
            vmem_limit_bytes=vmem_limit),
    )(x_p, w_eff, b_eff)
    return out if m_pad == input_a else out[:input_a]


def spottune_linear(x, weight, bias=None, *, tile_m=512, out_dtype=None):
    """Convenience one-shot wrapper (folds params per call; prefer caching the fold)."""
    w_eff, b_eff = fold_linear_params(weight, bias, x.shape[1])
    return spottune_linear_forward(x, w_eff, b_eff, tile_m=tile_m, out_dtype=out_dtype)


if __name__ == "__main__":
    key = jax.random.PRNGKey(0)
    kx, kw, kb = jax.random.split(key, 3)

    # Module config: Linear(in_features=48, out_features=24, bias=True).
    # Forward input is 2-D (input_a, input_b); pick input_b != in_features and
    # out_features != input_b so both eye() pad/truncate paths are exercised.
    in_features, out_features = 48, 24
    input_a, input_b = 64, 32

    # PyTorch reset_parameters(): kaiming_uniform_(a=sqrt(5)) == U(-1/sqrt(fan_in), 1/sqrt(fan_in));
    # bias ~ U(-1/sqrt(fan_in), 1/sqrt(fan_in)).
    bound = 1.0 / math.sqrt(in_features)
    weight = jax.random.uniform(kw, (out_features, in_features), jnp.float32, -bound, bound)
    bias = jax.random.uniform(kb, (out_features,), jnp.float32, -bound, bound)

    x = jax.random.normal(kx, (input_a, input_b), jnp.float32)

    # Fold once (cached across forwards), then the per-call work is just the kernel.
    w_eff, b_eff = jax.block_until_ready(fold_linear_params(weight, bias, input_b))

    out = spottune_linear_forward(x, w_eff, b_eff)      # tiny M -> single block, grid=(1,)
    jax.block_until_ready(out)

    # Reference: the literal eye-projection path from the PyTorch forward (f32).
    e1 = jnp.eye(input_b, in_features, dtype=jnp.float32)
    e2 = jnp.eye(out_features, input_b, dtype=jnp.float32)
    ref = ((x @ e1) @ weight.T + bias) @ e2

    assert out.shape == (input_a, input_b)
    assert out.dtype == x.dtype
    assert bool(jnp.all(jnp.isfinite(out)))
    assert bool(jnp.allclose(out, ref, atol=1e-2, rtol=5e-2))   # bf16-operand tolerance
    print("KERNEL_OK")
</pallas_src>

<mosaic_0001>
module attributes {stable_mosaic.version = 11 : i64} {
  func.func @_linear_kernel(%arg0: i32, %arg1: memref<64x32xf32, #tpu.memory_space<vmem>>, %arg2: memref<32x32xbf16, #tpu.memory_space<vmem>>, %arg3: memref<1x32xf32, #tpu.memory_space<vmem>>, %arg4: memref<64x32xf32, #tpu.memory_space<vmem>>) attributes {dimension_semantics = [#tpu.dimension_semantics<parallel>], iteration_bounds = array<i64: 1>, scalar_prefetch = 0 : i64, scratch_operands = 0 : i64, tpu.core_type = #tpu.core_type<tc>, window_params = [{transform_indices = @transform_0, window_bounds = array<i64: 64, 32>}, {pipeline_mode = #tpu.pipeline_mode<synchronous>, transform_indices = @transform_1, window_bounds = array<i64: 32, 32>}, {pipeline_mode = #tpu.pipeline_mode<synchronous>, transform_indices = @transform_2, window_bounds = array<i64: 1, 32>}, {transform_indices = @transform_3, window_bounds = array<i64: 64, 32>}]} {
    %c0 = arith.constant 0 : index
    %c0_0 = arith.constant 0 : index
    %0 = vector.load %arg1[%c0, %c0_0] : memref<64x32xf32, #tpu.memory_space<vmem>>, vector<64x32xf32>
    %1 = arith.truncf %0 : vector<64x32xf32> to vector<64x32xbf16>
    %c0_1 = arith.constant 0 : index
    %c0_2 = arith.constant 0 : index
    %2 = vector.load %arg2[%c0_1, %c0_2] : memref<32x32xbf16, #tpu.memory_space<vmem>>, vector<32x32xbf16>
    %cst = arith.constant dense<0.000000e+00> : vector<64x32xf32>
    %3 = tpu.matmul %1, %2, %cst {dimension_numbers = #tpu.dot_dimension_numbers<[1], [0], [0], [1], [0, 0, 1, 1], [], []>} : vector<64x32xbf16>, vector<32x32xbf16>, vector<64x32xf32> -> vector<64x32xf32>
    %c0_3 = arith.constant 0 : index
    %c0_4 = arith.constant 0 : index
    %4 = vector.load %arg3[%c0_3, %c0_4] : memref<1x32xf32, #tpu.memory_space<vmem>>, vector<1x32xf32>
    %5 = vector.broadcast %4 : vector<1x32xf32> to vector<64x32xf32>
    %6 = arith.addf %3, %5 : vector<64x32xf32>
    %c0_5 = arith.constant 0 : index
    %c0_6 = arith.constant 0 : index
    %7 = vector.load %arg4[%c0_5, %c0_6] : memref<64x32xf32, #tpu.memory_space<vmem>>, vector<64x32xf32>
    tpu.vector_store %arg4[%c0_5, %c0_6], %6 {strides = array<i32>} : memref<64x32xf32, #tpu.memory_space<vmem>>, vector<64x32xf32>,
    return
  }
  func.func @transform_0(%arg0: i32) -> (i32, i32) {
    %c0_i32 = arith.constant 0 : i32
    %c0_i32_0 = arith.constant 0 : i32
    return %arg0, %c0_i32 : i32, i32
  }
  func.func @transform_1(%arg0: i32) -> (i32, i32) {
    %c0_i32 = arith.constant 0 : i32
    %c0_i32_0 = arith.constant 0 : i32
    %c0_i32_1 = arith.constant 0 : i32
    return %c0_i32, %c0_i32_0 : i32, i32
  }
  func.func @transform_2(%arg0: i32) -> (i32, i32) {
    %c0_i32 = arith.constant 0 : i32
    %c0_i32_0 = arith.constant 0 : i32
    %c0_i32_1 = arith.constant 0 : i32
    return %c0_i32, %c0_i32_0 : i32, i32
  }
  func.func @transform_3(%arg0: i32) -> (i32, i32) {
    %c0_i32 = arith.constant 0 : i32
    %c0_i32_0 = arith.constant 0 : i32
    return %arg0, %c0_i32 : i32, i32
  }
}

</mosaic_0001>

<llo_original>
// kernel: tpu_custom_call.1
$region0: #{tpu_custom_call.1}
  #allocation0 [shape = 'u32[]', space=smem, size = 0x4, offset = 0x4, fixed_abs, tag = 'smem constant byte address 0x4 - core index']
  #allocation1 [shape = 'u32[72,128]{1,0:T(1,128)}', space=vmem, size = 0x9000, scoped, tag = 'internal scratch']
  %s0 = inlined_call_operand.vmem [shape: f32[64,32], index: 0, kind: input, shape index: {}]
  %s1 = inlined_call_operand.vmem [shape: bf16[32,32], index: 1, kind: input, shape index: {}]
  %s2 = inlined_call_operand.vmem [shape: f32[1,32], index: 2, kind: input, shape index: {}]
  %s3 = inlined_call_operand.vmem [shape: f32[64,32], index: 3, kind: output, shape index: {}]
  %s4 = sld [smem:[#allocation0]]
  $region22: #{tpu_custom_call.1} parent=0
    _
  %s6 = ssub.s32 1, %s4
  %s7 = scalar_select 0, %s6, %s4
  // Predicated region
  $region2: #{tpu_custom_call.1} parent=0 // pred_check
    _
  $region3: #{tpu_custom_call.1} parent=0 // pred_check_branch
    %9 = sbr.rel (0) target = $region5
  $region4: #{tpu_custom_call.1} parent=0 // pred_region
    _
  $region5: #{tpu_custom_call.1} parent=0 // pred_fallthru
    _
  // Predicated region
  $region6: #{tpu_custom_call.1} parent=0 // pred_check
    _
  $region7: #{tpu_custom_call.1} parent=0 // pred_check_branch
    %11 = sbr.rel (0) target = $region9
  $region8: #{tpu_custom_call.1} parent=0 // pred_region
    _
  $region9: #{tpu_custom_call.1} parent=0 // pred_fallthru
    _
  // Predicated region
  $region10: #{tpu_custom_call.1} parent=0 // pred_check
    _
  $region11: #{tpu_custom_call.1} parent=0 // pred_check_branch
    %13 = sbr.rel (0) target = $region13
  $region12: #{tpu_custom_call.1} parent=0 // pred_region
    _
  $region13: #{tpu_custom_call.1} parent=0 // pred_fallthru
    _
  %v15 = vld [vmem:[%s0] sm:$0xff]
  %v16 = vld [vmem:[%s0 + $0x8] sm:$0xff]
  %v17 = vld [vmem:[%s0 + $0x10] sm:$0xff]
  %v18 = vld [vmem:[%s0 + $0x18] sm:$0xff]
  %v19 = vld [vmem:[%s0 + $0x20] sm:$0xff]
  %v20 = vld [vmem:[%s0 + $0x28] sm:$0xff]
  %v21 = vld [vmem:[%s0 + $0x30] sm:$0xff]
  %v22 = vld [vmem:[%s0 + $0x38] sm:$0xff]
  %v23 = vpack.c.bf16 %v16, %v15
  %v24 = vpack.c.bf16 %v18, %v17
  %v25 = vpack.c.bf16 %v20, %v19
  %v26 = vpack.c.bf16 %v22, %v21
  %v27 = vld [vmem:[%s1] sm:$0xf]
  %v28 = vld [vmem:[%s1 + $0x4] sm:$0xf]
  %v29 = vld [vmem:[%s1 + $0x8] sm:$0xf]
  %v30 = vld [vmem:[%s1 + $0xc] sm:$0xf]
  %v31 = vld [vmem:[%s2] sm:$0x1]
  %v33 = vperm.slane %v31, 0
  %v39 = vunpack.c.l.b16 %v27
  %v40 = vunpack.c.l.b16 %v28
  %v41 = vunpack.c.l.b16 %v29
  %v42 = vunpack.c.l.b16 %v30
  %v43 = vpack.c.b16 %v40, %v39
  %v44 = vpack.c.b16 %v42, %v41
  %vm47 = vcmask 261120
  %v49 = vsel %vm47, %v23, 0
  %v52 = vsel %vm47, %v24, 0
  %v55 = vsel %vm47, %v25, 0
  %v58 = vsel %vm47, %v26, 0
  %60 = vmatpush.bf16.msra.mxu0 0
  %61 = vmatpush.bf16.msra.mxu0 0
  %62 = vmatpush.bf16.msra.mxu0 0
  %63 = vmatpush.bf16.msra.mxu0 0
  %64 = vmatpush.bf16.msra.mxu0 0
  %65 = vmatpush.bf16.msra.mxu0 0
  %66 = vmatpush.bf16.msra.mxu0 %v44
  %67 = vmatpush.bf16.msra.mxu0 %v43
  %68 = vmatmul.bf16.gmra.mxu0 %v49
  %v69 = vpop.f32.mrf.mxu0
  %v70 = vadd.f32 %v33, %v69
  %v71 = vpop.f32.mrf.mxu0
  %v72 = vadd.f32 %v33, %v71
  %73 = vmatmul.bf16.gmra.mxu0 %v52
  %v74 = vpop.f32.mrf.mxu0
  %v75 = vadd.f32 %v33, %v74
  %v76 = vpop.f32.mrf.mxu0
  %v77 = vadd.f32 %v33, %v76
  %78 = vmatmul.bf16.gmra.mxu0 %v55
  %v79 = vpop.f32.mrf.mxu0
  %v80 = vadd.f32 %v33, %v79
  %v81 = vpop.f32.mrf.mxu0
  %v82 = vadd.f32 %v33, %v81
  %83 = vmatmul.bf16.gmra.mxu0 %v58
  %v84 = vpop.f32.mrf.mxu0
  %v85 = vadd.f32 %v33, %v84
  %v86 = vpop.f32.mrf.mxu0
  %v87 = vadd.f32 %v33, %v86
  %88 = vdwg.mxu0
  %89 = vst.msk [vmem:[%s3] sm:$0xff] %vm47, %v70
  %90 = vst.msk [vmem:[%s3 + $0x8] sm:$0xff] %vm47, %v72
  %91 = vst.msk [vmem:[%s3 + $0x10] sm:$0xff] %vm47, %v75
  %92 = vst.msk [vmem:[%s3 + $0x18] sm:$0xff] %vm47, %v77
  %93 = vst.msk [vmem:[%s3 + $0x20] sm:$0xff] %vm47, %v80
  %94 = vst.msk [vmem:[%s3 + $0x28] sm:$0xff] %vm47, %v82
  %95 = vst.msk [vmem:[%s3 + $0x30] sm:$0xff] %vm47, %v85
  %96 = vst.msk [vmem:[%s3 + $0x38] sm:$0xff] %vm47, %v87
  // Predicated region
  $region14: #{tpu_custom_call.1} parent=0 // pred_check
    _
  $region15: #{tpu_custom_call.1} parent=0 // pred_check_branch
    %98 = sbr.rel (0) target = $region17
  $region16: #{tpu_custom_call.1} parent=0 // pred_region
    _
  $region17: #{tpu_custom_call.1} parent=0 // pred_fallthru
    _
  // Predicated region
  $region18: #{tpu_custom_call.1} parent=0 // pred_check
    _
  $region19: #{tpu_custom_call.1} parent=0 // pred_check_branch
    %100 = sbr.rel (0) target = $region21
  $region20: #{tpu_custom_call.1} parent=0 // pred_region
    _
  $region21: #{tpu_custom_call.1} parent=0 // pred_fallthru
    _

</llo_original>
